<compile_context>
chip_gen: v6e
topology: v6e:2x2x1
jax: 0.10.0
libtpu: 0.0.40
codegen_flags: <defaults>
</compile_context>

<pallas_src>
import functools

import jax
import jax.numpy as jnp
from jax.experimental import pallas as pl
from jax.experimental.pallas import tpu as pltpu

LANES = 128            # vreg lane width (hidden-dim padding target)
SUBLANES = 16          # bf16 sublane packing (multiple of the f32 8)
TILE_B_DEFAULT = 256   # batch tile; sweep 128 on v5e (vregs), 512-1024 on v6e (big batch)
_PARAM_SINGLE_BUFFER_BYTES = 4 << 20   # single-buffer params once they get this big


def _round_up(x: int, m: int) -> int:
    return ((x + m - 1) // m) * m


def _padded_feature_sizes(network_size):
    """Hidden feature dims padded to LANES; input K and output N stay unpadded
    (their blocks use the full array dim, which satisfies the (8,128) rule)."""
    sizes = list(network_size)
    last = len(sizes) - 1
    return tuple(s if i == 0 or i == last else _round_up(s, LANES)
                 for i, s in enumerate(sizes))


def _param_index_map(i):   # constant -> params stay resident in VMEM across grid steps
    return (0, 0)


def _make_mlp_kernel(nb_layers: int, compute_dtype):
    """Kernel fusing all linear layers + activations for one batch tile."""

    def kernel(x_ref, *refs):
        # refs layout: w0, b0, w1, b1, ..., w_{L-1}, b_{L-1}, out_ref
        out_ref = refs[-1]
        param_refs = refs[:-1]
        # x arrives as f32 straight from HBM; downcast in-VMEM for the MXU (free VPU op,
        # avoids a separate XLA cast kernel + extra HBM pass in the wrapper).
        h = x_ref[...].astype(compute_dtype)
        for i in range(nb_layers):
            w_ref = param_refs[2 * i]
            b_ref = param_refs[2 * i + 1]
            acc = jnp.dot(h, w_ref[...], preferred_element_type=jnp.float32)
            acc = acc + b_ref[...].astype(jnp.float32)
            if i < nb_layers - 1:            # ReLU on hidden layers, Identity on last
                h = jnp.maximum(acc, 0.0).astype(compute_dtype)
            else:
                out_ref[...] = acc.astype(out_ref.dtype)

    return kernel


def init_mlp_params(key, network_size, bias=True, dtype=jnp.bfloat16):
    """nn.Linear-like init (uniform +-1/sqrt(fan_in)). Weights stored transposed vs
    PyTorch: (in_f, out_f). Biases are (1, out_f). Stored in bf16 to halve HBM->VMEM
    DMA bytes; the kernel accumulates in f32."""
    params = []
    for in_f, out_f in zip(network_size, network_size[1:]):
        key, kw, kb = jax.random.split(key, 3)
        bound = 1.0 / (in_f ** 0.5)
        w = jax.random.uniform(kw, (in_f, out_f), jnp.float32,
                               minval=-bound, maxval=bound).astype(dtype)
        if bias:
            b = jax.random.uniform(kb, (1, out_f), jnp.float32,
                                   minval=-bound, maxval=bound).astype(dtype)
        else:
            b = jnp.zeros((1, out_f), dtype)
        params.extend([w, b])
    return params


def prepare_mlp_params(params, network_size):
    """One-time (outside jit) zero-padding of parameters to the kernel layout.
    Only hidden feature dims are padded (to LANES); layer-0 K and last-layer N stay
    unpadded so x / out DMAs carry only real bytes. Zero padding is exact through
    matmul + bias + ReLU, so results are unchanged."""
    nb_layers = len(network_size) - 1
    padded_sizes = _padded_feature_sizes(network_size)
    padded = []
    for i in range(nb_layers):
        fi, fo = network_size[i], network_size[i + 1]
        pi, po = padded_sizes[i], padded_sizes[i + 1]
        w, b = params[2 * i], params[2 * i + 1]
        padded.append(jnp.pad(w, ((0, pi - fi), (0, po - fo))))
        padded.append(jnp.pad(b, ((0, 0), (0, po - fo))))
    return padded


@functools.partial(jax.jit, static_argnums=(2, 3))
def mlp_forward(x, params, network_size, tile_b=TILE_B_DEFAULT):
    """Pallas-fused MLP forward. `params` must come from prepare_mlp_params().
    x may have any shape whose trailing dims multiply to in_features; it is flattened
    to (-1, in_features) like the PyTorch module."""
    in_features = network_size[0]
    out_features = network_size[-1]
    nb_layers = len(network_size) - 1
    padded_sizes = _padded_feature_sizes(network_size)
    param_dtype = params[0].dtype

    for i in range(nb_layers):
        pi, po = padded_sizes[i], padded_sizes[i + 1]
        if params[2 * i].shape != (pi, po) or params[2 * i + 1].shape != (1, po):
            raise ValueError(
                "mlp_forward expects parameters padded by prepare_mlp_params()")

    x2d = x.reshape(-1, in_features)
    batch = x2d.shape[0]

    # --- batch tiling (no over-padding; ragged last tile is fine: rows independent) --
    padded_batch = _round_up(batch, 8)            # sublane alignment only
    if padded_batch != batch:
        x2d = jnp.pad(x2d, ((0, padded_batch - batch), (0, 0)))
    tile_b = max(8, min(tile_b, padded_batch))
    if pl.cdiv(padded_batch, tile_b) < 2 and padded_batch >= 2 * SUBLANES:
        # Split into >=2 tiles so both v7x TensorCores get work (also lowers v5e vreg
        # pressure); costs at most one extra ~0.35us grid step on single-TC chips.
        tile_b = _round_up(pl.cdiv(padded_batch, 2), SUBLANES)
    num_tiles = pl.cdiv(padded_batch, tile_b)

    # --- BlockSpecs -----------------------------------------------------------------
    x_spec = pl.BlockSpec((tile_b, in_features), lambda i: (i, 0))
    out_spec = pl.BlockSpec((tile_b, out_features), lambda i: (i, 0))

    itemsize = jnp.dtype(param_dtype).itemsize
    weight_bytes = sum(pi * po * itemsize
                       for pi, po in zip(padded_sizes, padded_sizes[1:]))
    bias_bytes = sum(po * itemsize for po in padded_sizes[1:])
    resident_param_bytes = weight_bytes + bias_bytes

    # Constant index_map keeps params resident; once they are big enough to matter,
    # also ask for single-buffering so they are not double-buffered in VMEM.
    param_spec_kwargs = {}
    param_buffers = 2
    if resident_param_bytes >= _PARAM_SINGLE_BUFFER_BYTES:
        param_spec_kwargs = dict(pipeline_mode=pl.Buffered(1))
        param_buffers = 1

    param_specs = []
    for i in range(nb_layers):
        pi, po = padded_sizes[i], padded_sizes[i + 1]
        param_specs.append(
            pl.BlockSpec((pi, po), _param_index_map, **param_spec_kwargs))
        param_specs.append(
            pl.BlockSpec((1, po), _param_index_map, **param_spec_kwargs))

    # --- per-chip VMEM budget + cost estimate -----------------------------------------
    x_itemsize = jnp.dtype(x2d.dtype).itemsize
    max_p = max(padded_sizes)
    vmem_need = (param_buffers * resident_param_bytes
                 + 2 * tile_b * padded_sizes[0] * x_itemsize   # double-buffered input
                 + 2 * tile_b * padded_sizes[-1] * 4           # double-buffered output
                 + 4 * tile_b * max_p * 4)                     # activation headroom
    try:
        vmem_cap = pltpu.get_tpu_info().vmem_capacity_bytes
    except Exception:
        vmem_cap = 64 * 2 ** 20   # conservative fallback: assume v7x-sized VMEM
    vmem_limit = int(min(max(2 * vmem_need, 32 * 2 ** 20), int(0.85 * vmem_cap)))
    # TODO(synk): if resident_param_bytes ever approaches vmem_cap, fall back to tiling
    # weights over a layer/K grid axis instead of keeping all layers resident.

    flops = 2 * padded_batch * sum(pi * po for pi, po
                                   in zip(padded_sizes, padded_sizes[1:]))
    bytes_accessed = (resident_param_bytes
                      + padded_batch * padded_sizes[0] * x_itemsize
                      + padded_batch * padded_sizes[-1] * 4)

    out = pl.pallas_call(
        _make_mlp_kernel(nb_layers, param_dtype),
        out_shape=jax.ShapeDtypeStruct((padded_batch, out_features), jnp.float32),
        grid=(num_tiles,),
        in_specs=[x_spec] + param_specs,
        out_specs=out_spec,
        compiler_params=pltpu.CompilerParams(
            dimension_semantics=("parallel",),
            vmem_limit_bytes=vmem_limit),
        cost_estimate=pl.CostEstimate(flops=flops, transcendentals=0,
                                      bytes_accessed=bytes_accessed),
    )(x2d, *params)

    if padded_batch != batch:
        out = out[:batch]
    return out


def mlp_reference(x, params, network_size):
    """Pure-JAX reference matching the kernel's mixed precision
    (bf16 matmul operands, f32 accumulation, f32 bias/ReLU). Takes UNPADDED params."""
    nb_layers = len(network_size) - 1
    compute_dtype = params[0].dtype
    h = x.reshape(-1, network_size[0]).astype(compute_dtype)
    out = None
    for i in range(nb_layers):
        w = params[2 * i].astype(jnp.float32)
        b = params[2 * i + 1].astype(jnp.float32)
        y = h.astype(jnp.float32) @ w + b
        if i < nb_layers - 1:
            h = jnp.maximum(y, 0.0).astype(compute_dtype)
        else:
            out = y
    return out


if __name__ == "__main__":
    key = jax.random.PRNGKey(0)

    # network_size = (in_features, hidden..., out_features)
    network_size = (16, 32, 32, 8)

    k_params, k_x = jax.random.split(key)
    params = init_mlp_params(k_params, network_size, bias=True)
    # One-time padding outside the jitted per-call path (perf review item #1).
    padded_params = prepare_mlp_params(params, network_size)

    # input_powers of shape (4, 8, 16, 16) -> flattened to (512, 16) inside the
    # forward, exactly like the PyTorch module's reshape(-1, in_features).
    x = jax.random.normal(k_x, (4, 8, 16, 16), dtype=jnp.float32)

    out = mlp_forward(x, padded_params, network_size)
    out = jax.block_until_ready(out)

    ref = mlp_reference(x, params, network_size)
    assert out.shape == (512, network_size[-1]), out.shape
    assert jnp.allclose(out, ref, atol=1e-3, rtol=1e-3), (
        float(jnp.max(jnp.abs(out - ref))))

    # TODO(synk): the PyTorch module also stashes per-layer activations in
    # self.outputs / self.outputs_act; only the final output is returned here.
    print("KERNEL_OK")
</pallas_src>

<mosaic_0001>
module attributes {stable_mosaic.version = 11 : i64} {
  func.func @kernel(%arg0: i32, %arg1: memref<256x16xf32, #tpu.memory_space<vmem>>, %arg2: memref<16x128xbf16, #tpu.memory_space<vmem>>, %arg3: memref<1x128xbf16, #tpu.memory_space<vmem>>, %arg4: memref<128x128xbf16, #tpu.memory_space<vmem>>, %arg5: memref<1x128xbf16, #tpu.memory_space<vmem>>, %arg6: memref<128x8xbf16, #tpu.memory_space<vmem>>, %arg7: memref<1x8xbf16, #tpu.memory_space<vmem>>, %arg8: memref<256x8xf32, #tpu.memory_space<vmem>>) attributes {dimension_semantics = [#tpu.dimension_semantics<parallel>], iteration_bounds = array<i64: 2>, scalar_prefetch = 0 : i64, scratch_operands = 0 : i64, tpu.core_type = #tpu.core_type<tc>, window_params = [{transform_indices = @transform_0, window_bounds = array<i64: 256, 16>}, {pipeline_mode = #tpu.pipeline_mode<synchronous>, transform_indices = @transform_1, window_bounds = array<i64: 16, 128>}, {pipeline_mode = #tpu.pipeline_mode<synchronous>, transform_indices = @transform_2, window_bounds = array<i64: 1, 128>}, {pipeline_mode = #tpu.pipeline_mode<synchronous>, transform_indices = @transform_3, window_bounds = array<i64: 128, 128>}, {pipeline_mode = #tpu.pipeline_mode<synchronous>, transform_indices = @transform_4, window_bounds = array<i64: 1, 128>}, {pipeline_mode = #tpu.pipeline_mode<synchronous>, transform_indices = @transform_5, window_bounds = array<i64: 128, 8>}, {pipeline_mode = #tpu.pipeline_mode<synchronous>, transform_indices = @transform_6, window_bounds = array<i64: 1, 8>}, {transform_indices = @transform_7, window_bounds = array<i64: 256, 8>}]} {
    %c0 = arith.constant 0 : index
    %c0_0 = arith.constant 0 : index
    %0 = vector.load %arg1[%c0, %c0_0] : memref<256x16xf32, #tpu.memory_space<vmem>>, vector<256x16xf32>
    %1 = arith.truncf %0 : vector<256x16xf32> to vector<256x16xbf16>
    %c0_1 = arith.constant 0 : index
    %c0_2 = arith.constant 0 : index
    %2 = vector.load %arg2[%c0_1, %c0_2] : memref<16x128xbf16, #tpu.memory_space<vmem>>, vector<16x128xbf16>
    %cst = arith.constant dense<0.000000e+00> : vector<256x128xf32>
    %3 = tpu.matmul %1, %2, %cst {dimension_numbers = #tpu.dot_dimension_numbers<[1], [0], [0], [1], [0, 0, 1, 1], [], []>} : vector<256x16xbf16>, vector<16x128xbf16>, vector<256x128xf32> -> vector<256x128xf32>
    %c0_3 = arith.constant 0 : index
    %c0_4 = arith.constant 0 : index
    %4 = vector.load %arg3[%c0_3, %c0_4] : memref<1x128xbf16, #tpu.memory_space<vmem>>, vector<1x128xbf16>
    %5 = arith.extf %4 : vector<1x128xbf16> to vector<1x128xf32>
    %6 = vector.broadcast %5 : vector<1x128xf32> to vector<256x128xf32>
    %7 = arith.addf %3, %6 : vector<256x128xf32>
    %cst_5 = arith.constant 0.000000e+00 : f32
    %8 = vector.broadcast %cst_5 : f32 to vector<256x128xf32>
    %9 = arith.maximumf %7, %8 : vector<256x128xf32>
    %10 = arith.truncf %9 : vector<256x128xf32> to vector<256x128xbf16>
    %c0_6 = arith.constant 0 : index
    %c0_7 = arith.constant 0 : index
    %11 = vector.load %arg4[%c0_6, %c0_7] : memref<128x128xbf16, #tpu.memory_space<vmem>>, vector<128x128xbf16>
    %cst_8 = arith.constant dense<0.000000e+00> : vector<256x128xf32>
    %12 = tpu.matmul %10, %11, %cst_8 {dimension_numbers = #tpu.dot_dimension_numbers<[1], [0], [0], [1], [0, 0, 1, 1], [], []>} : vector<256x128xbf16>, vector<128x128xbf16>, vector<256x128xf32> -> vector<256x128xf32>
    %c0_9 = arith.constant 0 : index
    %c0_10 = arith.constant 0 : index
    %13 = vector.load %arg5[%c0_9, %c0_10] : memref<1x128xbf16, #tpu.memory_space<vmem>>, vector<1x128xbf16>
    %14 = arith.extf %13 : vector<1x128xbf16> to vector<1x128xf32>
    %15 = vector.broadcast %14 : vector<1x128xf32> to vector<256x128xf32>
    %16 = arith.addf %12, %15 : vector<256x128xf32>
    %cst_11 = arith.constant 0.000000e+00 : f32
    %17 = vector.broadcast %cst_11 : f32 to vector<256x128xf32>
    %18 = arith.maximumf %16, %17 : vector<256x128xf32>
    %19 = arith.truncf %18 : vector<256x128xf32> to vector<256x128xbf16>
    %c0_12 = arith.constant 0 : index
    %c0_13 = arith.constant 0 : index
    %20 = vector.load %arg6[%c0_12, %c0_13] : memref<128x8xbf16, #tpu.memory_space<vmem>>, vector<128x8xbf16>
    %cst_14 = arith.constant dense<0.000000e+00> : vector<256x8xf32>
    %21 = tpu.matmul %19, %20, %cst_14 {dimension_numbers = #tpu.dot_dimension_numbers<[1], [0], [0], [1], [0, 0, 1, 1], [], []>} : vector<256x128xbf16>, vector<128x8xbf16>, vector<256x8xf32> -> vector<256x8xf32>
    %c0_15 = arith.constant 0 : index
    %c0_16 = arith.constant 0 : index
    %22 = vector.load %arg7[%c0_15, %c0_16] : memref<1x8xbf16, #tpu.memory_space<vmem>>, vector<1x8xbf16>
    %23 = arith.extf %22 : vector<1x8xbf16> to vector<1x8xf32>
    %24 = vector.broadcast %23 : vector<1x8xf32> to vector<256x8xf32>
    %25 = arith.addf %21, %24 : vector<256x8xf32>
    %c0_17 = arith.constant 0 : index
    %c0_18 = arith.constant 0 : index
    %26 = vector.load %arg8[%c0_17, %c0_18] : memref<256x8xf32, #tpu.memory_space<vmem>>, vector<256x8xf32>
    tpu.vector_store %arg8[%c0_17, %c0_18], %25 {strides = array<i32>} : memref<256x8xf32, #tpu.memory_space<vmem>>, vector<256x8xf32>,
    return
  }
  func.func @transform_0(%arg0: i32) -> (i32, i32) {
    %c0_i32 = arith.constant 0 : i32
    %c0_i32_0 = arith.constant 0 : i32
    return %arg0, %c0_i32 : i32, i32
  }
  func.func @transform_1(%arg0: i32) -> (i32, i32) {
    %c0_i32 = arith.constant 0 : i32
    %c0_i32_0 = arith.constant 0 : i32
    %c0_i32_1 = arith.constant 0 : i32
    return %c0_i32, %c0_i32_0 : i32, i32
  }
  func.func @transform_2(%arg0: i32) -> (i32, i32) {
    %c0_i32 = arith.constant 0 : i32
    %c0_i32_0 = arith.constant 0 : i32
    %c0_i32_1 = arith.constant 0 : i32
    return %c0_i32, %c0_i32_0 : i32, i32
  }
  func.func @transform_3(%arg0: i32) -> (i32, i32) {
    %c0_i32 = arith.constant 0 : i32
    %c0_i32_0 = arith.constant 0 : i32
    %c0_i32_1 = arith.constant 0 : i32
    return %c0_i32, %c0_i32_0 : i32, i32
  }
  func.func @transform_4(%arg0: i32) -> (i32, i32) {
    %c0_i32 = arith.constant 0 : i32
    %c0_i32_0 = arith.constant 0 : i32
    %c0_i32_1 = arith.constant 0 : i32
    return %c0_i32, %c0_i32_0 : i32, i32
  }
  func.func @transform_5(%arg0: i32) -> (i32, i32) {
    %c0_i32 = arith.constant 0 : i32
    %c0_i32_0 = arith.constant 0 : i32
    %c0_i32_1 = arith.constant 0 : i32
    return %c0_i32, %c0_i32_0 : i32, i32
  }
  func.func @transform_6(%arg0: i32) -> (i32, i32) {
    %c0_i32 = arith.constant 0 : i32
    %c0_i32_0 = arith.constant 0 : i32
    %c0_i32_1 = arith.constant 0 : i32
    return %c0_i32, %c0_i32_0 : i32, i32
  }
  func.func @transform_7(%arg0: i32) -> (i32, i32) {
    %c0_i32 = arith.constant 0 : i32
    %c0_i32_0 = arith.constant 0 : i32
    return %arg0, %c0_i32 : i32, i32
  }
}

</mosaic_0001>

<llo_original>
// kernel: mlp_forward.1
$region0: #{mlp_forward.1}
  #allocation0 [shape = 'u32[]', space=smem, size = 0x4, offset = 0x4, fixed_abs, tag = 'smem constant byte address 0x4 - core index']
  #allocation1 [shape = 'u32[144,128]{1,0:T(1,128)}', space=vmem, size = 0x12000, scoped, tag = 'internal scratch']
  %s0 = inlined_call_operand.hbm [shape: f32[512,16], index: 0, kind: input, shape index: {}]
  %s1 = inlined_call_operand.vmem [shape: bf16[16,128], index: 1, kind: input, shape index: {}]
  %s2 = inlined_call_operand.vmem [shape: bf16[1,128], index: 2, kind: input, shape index: {}]
  %s3 = inlined_call_operand.vmem [shape: bf16[128,128], index: 3, kind: input, shape index: {}]
  %s4 = inlined_call_operand.hbm [shape: bf16[1,128], index: 4, kind: input, shape index: {}]
  %s5 = inlined_call_operand.vmem [shape: bf16[128,8], index: 5, kind: input, shape index: {}]
  %s6 = inlined_call_operand.vmem [shape: bf16[1,8], index: 6, kind: input, shape index: {}]
  %s7 = inlined_call_operand.vmem [shape: f32[512,8], index: 7, kind: output, shape index: {}]
  %s8 = sld [smem:[#allocation0]]
  $region69: #{mlp_forward.1} parent=0
    _
  %s10 = ssub.s32 1, %s8
  %s11 = scalar_select 0, %s10, %s8
  $region1: #{mlp_forward.1} parent=0
    #allocation2 [shape = 'u8[262144]{0}', space=vmem, size = 0x40000, scoped, tag = 'input window, operand 0']
    #allocation3 [shape = 's32[2]{0}', space=sflag, size = 0x8, scoped, tag = 'scoped memory for mlp_forward.1']
    #allocation4 [shape = 'u8[512]{0}', space=vmem, size = 0x400, scoped, tag = 'input window, operand 4, single buffered']
    #allocation5 [shape = 's32[1]{0}', space=sflag, size = 0x4, scoped, tag = 'scoped memory for mlp_forward.1']
    %12 = vsyncpa [#allocation3], 0
    %s13 = scalar_lea.sflag [#allocation3], 1
    %14 = vsyncpa %s13, 0
    %15 = vsyncpa [#allocation5], 0
    loop: start=0, step=1, limit=4
    $region2: #{mlp_forward.1} parent=1 // loop_pre_header
      _
    $region3: #{mlp_forward.1} parent=1 // loop_header
      %s17 = sphi 0, %s21
      %p18 = scmp.ge.s32.totalorder %s17, 4
      %s27 = sphi 0, %s29
      %s30 = sphi 0, %s27
      %s31 = sphi 0, %s30
      %s47 = sphi 0, %s31
      %s51 = sphi 0, %s51
      %s53 = sphi 0, %s51
      %s54 = sphi 0, %s53
      %s68 = sphi 0, %s54
      %s72 = sphi 0, %s72
      %s74 = sphi 0, %s72
      %s75 = sphi 0, %s74
      %s89 = sphi 0, %s75
      %s93 = sphi 0, %s93
      %s95 = sphi 0, %s93
      %s96 = sphi 0, %s95
      %s110 = sphi 0, %s96
      %s114 = sphi 0, %s114
      %s116 = sphi 0, %s114
      %s117 = sphi 0, %s116
      %s131 = sphi 0, %s117
      %s135 = sphi 0, %s135
      %s137 = sphi 0, %s135
      %s138 = sphi 0, %s137
      %s152 = sphi 0, %s138
      %s156 = sphi 0, %s156
      %s158 = sphi 0, %s156
      %s159 = sphi 0, %s158
      %s173 = sphi 0, %s159
      %s179 = sphi 0, %s181
      %s182 = sphi 0, %s179
      %s183 = sphi 0, %s182
      %s199 = sphi 0, %s183
    $region4: #{mlp_forward.1} parent=1 // loop_header_branch
      %20 = sbr.rel (%p18) target = $region8
    $region5: #{mlp_forward.1} parent=1 // loop_body
      %s22 = ssub.s32 %s17, 1
      %s23 = ssub.s32 %s17, 2
      %s24 = sadd.s32 %s17, 1
      %s25 = ssub.s32 %s17, %s24
      %p26 = scmp.eq.s32.totalorder %s25, 0
      %s28 = sadd.s32 %s27, 1
      %s29 = scalar_select %p26, %s27, %s28
      %p32 = pneg %p26
      %p33 = scmp.eq.s32.totalorder %s17, 1
      %p34 = por %p32, %p33
      %p35 = scmp.ne.s32.totalorder %s27, %s30
      %p36 = scmp.eq.s32.totalorder %s17, 0
      %p37 = por %p35, %p36
      %p38 = scmp.ne.s32.totalorder %s27, %s30
      %p39 = scmp.eq.s32.totalorder %s22, 1
      %p40 = por %p38, %p39
      %p41 = scmp.ne.s32.totalorder %s30, %s31
      %p42 = scmp.eq.s32.totalorder %s22, 0
      %p43 = por %p41, %p42
      %p44 = scmp.ne.s32.totalorder %s30, %s31
      %p45 = scmp.eq.s32.totalorder %s23, 1
      %p46 = por %p44, %p45
      %p48 = scmp.ne.s32.totalorder %s31, %s47
      %p49 = scmp.eq.s32.totalorder %s23, 0
      %p50 = por %p48, %p49
      %s52 = sadd.s32 %s51, 1
      %p55 = scmp.eq.s32.totalorder %s17, 1
      %p56 = scmp.ne.s32.totalorder %s51, %s53
      %p57 = scmp.eq.s32.totalorder %s17, 0
      %p58 = por %p56, %p57
      %p59 = scmp.ne.s32.totalorder %s51, %s53
      %p60 = scmp.eq.s32.totalorder %s22, 1
      %p61 = por %p59, %p60
      %p62 = scmp.ne.s32.totalorder %s53, %s54
      %p63 = scmp.eq.s32.totalorder %s22, 0
      %p64 = por %p62, %p63
      %p65 = scmp.ne.s32.totalorder %s53, %s54
      %p66 = scmp.eq.s32.totalorder %s23, 1
      %p67 = por %p65, %p66
      %p69 = scmp.ne.s32.totalorder %s54, %s68
      %p70 = scmp.eq.s32.totalorder %s23, 0
      %p71 = por %p69, %p70
      %s73 = sadd.s32 %s72, 1
      %p76 = scmp.eq.s32.totalorder %s17, 1
      %p77 = scmp.ne.s32.totalorder %s72, %s74
      %p78 = scmp.eq.s32.totalorder %s17, 0
      %p79 = por %p77, %p78
      %p80 = scmp.ne.s32.totalorder %s72, %s74
      %p81 = scmp.eq.s32.totalorder %s22, 1
      %p82 = por %p80, %p81
      %p83 = scmp.ne.s32.totalorder %s74, %s75
      %p84 = scmp.eq.s32.totalorder %s22, 0
      %p85 = por %p83, %p84
      %p86 = scmp.ne.s32.totalorder %s74, %s75
      %p87 = scmp.eq.s32.totalorder %s23, 1
      %p88 = por %p86, %p87
      %p90 = scmp.ne.s32.totalorder %s75, %s89
      %p91 = scmp.eq.s32.totalorder %s23, 0
      %p92 = por %p90, %p91
      %s94 = sadd.s32 %s93, 1
      %p97 = scmp.eq.s32.totalorder %s17, 1
      %p98 = scmp.ne.s32.totalorder %s93, %s95
      %p99 = scmp.eq.s32.totalorder %s17, 0
      %p100 = por %p98, %p99
      %p101 = scmp.ne.s32.totalorder %s93, %s95
      %p102 = scmp.eq.s32.totalorder %s22, 1
      %p103 = por %p101, %p102
      %p104 = scmp.ne.s32.totalorder %s95, %s96
      %p105 = scmp.eq.s32.totalorder %s22, 0
      %p106 = por %p104, %p105
      %p107 = scmp.ne.s32.totalorder %s95, %s96
      %p108 = scmp.eq.s32.totalorder %s23, 1
      %p109 = por %p107, %p108
      %p111 = scmp.ne.s32.totalorder %s96, %s110
      %p112 = scmp.eq.s32.totalorder %s23, 0
      %p113 = por %p111, %p112
      %s115 = sadd.s32 %s114, 1
      %p118 = scmp.eq.s32.totalorder %s17, 1
      %p119 = scmp.ne.s32.totalorder %s114, %s116
      %p120 = scmp.eq.s32.totalorder %s17, 0
      %p121 = por %p119, %p120
      %p122 = scmp.ne.s32.totalorder %s114, %s116
      %p123 = scmp.eq.s32.totalorder %s22, 1
      %p124 = por %p122, %p123
      %p125 = scmp.ne.s32.totalorder %s116, %s117
      %p126 = scmp.eq.s32.totalorder %s22, 0
      %p127 = por %p125, %p126
      %p128 = scmp.ne.s32.totalorder %s116, %s117
      %p129 = scmp.eq.s32.totalorder %s23, 1
      %p130 = por %p128, %p129
      %p132 = scmp.ne.s32.totalorder %s117, %s131
      %p133 = scmp.eq.s32.totalorder %s23, 0
      %p134 = por %p132, %p133
      %s136 = sadd.s32 %s135, 1
      %p139 = scmp.eq.s32.totalorder %s17, 1
      %p140 = scmp.ne.s32.totalorder %s135, %s137
      %p141 = scmp.eq.s32.totalorder %s17, 0
      %p142 = por %p140, %p141
      %p143 = scmp.ne.s32.totalorder %s135, %s137
      %p144 = scmp.eq.s32.totalorder %s22, 1
      %p145 = por %p143, %p144
      %p146 = scmp.ne.s32.totalorder %s137, %s138
      %p147 = scmp.eq.s32.totalorder %s22, 0
      %p148 = por %p146, %p147
      %p149 = scmp.ne.s32.totalorder %s137, %s138
      %p150 = scmp.eq.s32.totalorder %s23, 1
      %p151 = por %p149, %p150
      %p153 = scmp.ne.s32.totalorder %s138, %s152
      %p154 = scmp.eq.s32.totalorder %s23, 0
      %p155 = por %p153, %p154
      %s157 = sadd.s32 %s156, 1
      %p160 = scmp.eq.s32.totalorder %s17, 1
      %p161 = scmp.ne.s32.totalorder %s156, %s158
      %p162 = scmp.eq.s32.totalorder %s17, 0
      %p163 = por %p161, %p162
      %p164 = scmp.ne.s32.totalorder %s156, %s158
      %p165 = scmp.eq.s32.totalorder %s22, 1
      %p166 = por %p164, %p165
      %p167 = scmp.ne.s32.totalorder %s158, %s159
      %p168 = scmp.eq.s32.totalorder %s22, 0
      %p169 = por %p167, %p168
      %p170 = scmp.ne.s32.totalorder %s158, %s159
      %p171 = scmp.eq.s32.totalorder %s23, 1
      %p172 = por %p170, %p171
      %p174 = scmp.ne.s32.totalorder %s159, %s173
      %p175 = scmp.eq.s32.totalorder %s23, 0
      %p176 = por %p174, %p175
      %s177 = ssub.s32 %s17, %s24
      %p178 = scmp.eq.s32.totalorder %s177, 0
      %s180 = sadd.s32 %s179, 1
      %s181 = scalar_select %p178, %s179, %s180
      %p184 = pneg %p178
      %p185 = scmp.eq.s32.totalorder %s17, 1
      %p186 = por %p184, %p185
      %p187 = scmp.ne.s32.totalorder %s179, %s182
      %p188 = scmp.eq.s32.totalorder %s17, 0
      %p189 = por %p187, %p188
      %p190 = scmp.ne.s32.totalorder %s179, %s182
      %p191 = scmp.eq.s32.totalorder %s22, 1
      %p192 = por %p190, %p191
      %p193 = scmp.ne.s32.totalorder %s182, %s183
      %p194 = scmp.eq.s32.totalorder %s22, 0
      %p195 = por %p193, %p194
      %p196 = scmp.ne.s32.totalorder %s182, %s183
      %p197 = scmp.eq.s32.totalorder %s23, 1
      %p198 = por %p196, %p197
      %p200 = scmp.ne.s32.totalorder %s183, %s199
      %p201 = scmp.eq.s32.totalorder %s23, 0
      %p202 = por %p200, %p201
      %p203 = scmp.le.s32.totalorder 1, %s17
      %p204 = scmp.lt.s32.totalorder %s17, 3
      %p205 = pnand %p203, %p204
      %p206 = pneg %p205
      // Predicated region
      $region9: #{mlp_forward.1} parent=5 // pred_check
        _
      $region10: #{mlp_forward.1} parent=5 // pred_check_branch
        %208 = sbr.rel (%p205) target = $region12
      $region11: #{mlp_forward.1} parent=5 // pred_region
        %s209 = ssub.s32 %s17, 1
        // Predicated region
        $region13: #{mlp_forward.1} parent=11 // pred_check
          %p210 = pneg %p64
        $region14: #{mlp_forward.1} parent=11 // pred_check_branch
          %212 = sbr.rel (%p210) target = $region16
        $region15: #{mlp_forward.1} parent=11 // pred_region
          _
        $region16: #{mlp_forward.1} parent=11 // pred_fallthru
          _
        // Predicated region
        $region17: #{mlp_forward.1} parent=11 // pred_check
          %p213 = pneg %p85
        $region18: #{mlp_forward.1} parent=11 // pred_check_branch
          %215 = sbr.rel (%p213) target = $region20
        $region19: #{mlp_forward.1} parent=11 // pred_region
          _
        $region20: #{mlp_forward.1} parent=11 // pred_fallthru
          _
        // Predicated region
        $region21: #{mlp_forward.1} parent=11 // pred_check
          %p216 = pneg %p106
        $region22: #{mlp_forward.1} parent=11 // pred_check_branch
          %218 = sbr.rel (%p216) target = $region24
        $region23: #{mlp_forward.1} parent=11 // pred_region
          _
        $region24: #{mlp_forward.1} parent=11 // pred_fallthru
          _
        // Predicated region
        $region25: #{mlp_forward.1} parent=11 // pred_check
          %p219 = pneg %p127
        $region26: #{mlp_forward.1} parent=11 // pred_check_branch
          %221 = sbr.rel (%p219) target = $region28
        $region27: #{mlp_forward.1} parent=11 // pred_region
          %s223 = ssub.s32 16, 16
          %224 = vsyncadd [#allocation5], %s223
          %s226 = sshll.u32 [#allocation4], 4
          %s227 = int_to_ptr.vmem [resolvable:$true] %s226
          %229 = dma.hbm_to_vmem [thread:$0]  %s4, 16, %s227, [#allocation5]
        $region28: #{mlp_forward.1} parent=11 // pred_fallthru
          _
        // Predicated region
        $region29: #{mlp_forward.1} parent=11 // pred_check
          %p230 = pneg %p148
        $region30: #{mlp_forward.1} parent=11 // pred_check_branch
          %232 = sbr.rel (%p230) target = $region32
        $region31: #{mlp_forward.1} parent=11 // pred_region
          _
        $region32: #{mlp_forward.1} parent=11 // pred_fallthru
          _
        // Predicated region
        $region33: #{mlp_forward.1} parent=11 // pred_check
          %p233 = pneg %p169
        $region34: #{mlp_forward.1} parent=11 // pred_check_branch
          %235 = sbr.rel (%p233) target = $region36
        $region35: #{mlp_forward.1} parent=11 // pred_region
          _
        $region36: #{mlp_forward.1} parent=11 // pred_fallthru
          _
      $region12: #{mlp_forward.1} parent=5 // pred_fallthru
        _
      %p236 = scmp.lt.s32.totalorder %s17, 2
      // Predicated region
      $region37: #{mlp_forward.1} parent=5 // pred_check
        %p237 = pneg %p236
      $region38: #{mlp_forward.1} parent=5 // pred_check_branch
        %239 = sbr.rel (%p237) target = $region40
      $region39: #{mlp_forward.1} parent=5 // pred_region
        // Predicated region
        $region41: #{mlp_forward.1} parent=39 // pred_check
          %p240 = pneg %p37
        $region42: #{mlp_forward.1} parent=39 // pred_check_branch
          %242 = sbr.rel (%p240) target = $region44
        $region43: #{mlp_forward.1} parent=39 // pred_region
          %s243 = sand.u32 %s27, 1
          %s244 = scalar_lea.sflag [#allocation3], %s243
          %s245 = sand.u32 %s27, 1
          %s246 = smul.addr %s245, 256
          %s247 = scalar_lea.vmem [#allocation2], %s246
          %s248 = smul.u32 32, %s17
          %s250 = ssub.s32 4096, 4096
          %251 = vsyncadd %s244, %s250
          %s252 = smul.addr %s248, 128
          %s253 = scalar_lea.hbm %s0, %s252
          %s254 = sshll.u32 %s247, 4
          %s255 = int_to_ptr.vmem [resolvable:$true] %s254
          %260 = dma.hbm_to_vmem [thread:$0]  %s253, 4096, %s255, %s244, 128, 128, 8
        $region44: #{mlp_forward.1} parent=39 // pred_fallthru
          _
      $region40: #{mlp_forward.1} parent=5 // pred_fallthru
        _
      %p261 = scmp.le.s32.totalorder 1, %s17
      %p262 = scmp.lt.s32.totalorder %s17, 3
      %p263 = pnand %p261, %p262
      %p264 = pneg %p263
      // Predicated region
      $region45: #{mlp_forward.1} parent=5 // pred_check
        _
      $region46: #{mlp_forward.1} parent=5 // pred_check_branch
        %266 = sbr.rel (%p263) target = $region48
      $region47: #{mlp_forward.1} parent=5 // pred_region
        %s267 = ssub.s32 %s17, 1
        %s268 = sand.u32 %s30, 1
        %s269 = scalar_lea.sflag [#allocation3], %s268
        %s270 = sand.u32 %s30, 1
        %s271 = smul.addr %s270, 256
        %s272 = scalar_lea.vmem [#allocation2], %s271
        // Predicated region
        $region49: #{mlp_forward.1} parent=47 // pred_check
          %p273 = pneg %p43
        $region50: #{mlp_forward.1} parent=47 // pred_check_branch
          %275 = sbr.rel (%p273) target = $region52
        $region51: #{mlp_forward.1} parent=47 // pred_region
          %276 = dma.done %s269, 4096
        $region52: #{mlp_forward.1} parent=47 // pred_fallthru
          _
        // Predicated region
        $region53: #{mlp_forward.1} parent=47 // pred_check
          %p277 = pneg %p127
        $region54: #{mlp_forward.1} parent=47 // pred_check_branch
          %279 = sbr.rel (%p277) target = $region56
        $region55: #{mlp_forward.1} parent=47 // pred_region
          %280 = dma.done [#allocation5], 16
        $region56: #{mlp_forward.1} parent=47 // pred_fallthru
          _
        %s281 = sand.u32 %s30, 1
        %s282 = scalar_lea.sflag [#allocation3], %s281
        %s283 = sand.u32 %s30, 1
        %s284 = smul.addr %s283, 256
        %s285 = scalar_lea.vmem [#allocation2], %s284
        %p286 = pneg %p43
        %p287 = pneg %p40
        %p288 = pneg %p64
        %p289 = pneg %p61
        %p290 = pneg %p85
        %p291 = pneg %p82
        %p292 = pneg %p106
        %p293 = pneg %p103
        %p294 = pneg %p127
        %p295 = pneg %p124
        %p296 = pneg %p148
        %p297 = pneg %p145
        %p298 = pneg %p169
        %p299 = pneg %p166
        %p300 = pneg %p195
        %p301 = pneg %p192
        %s302 = smul.u32 32, %s22
        %p303 = scmp.lt.s32.totalorder %s302, 63
        %s304 = scalar_select %p303, %s302, 63
        %s305 = smul.addr %s304, 8
        %s306 = scalar_lea.vmem %s7, %s305
        %s307 = smul.u32 32, %s22
        %s308 = smul.u32 32, %s22
        %p309 = scmp.lt.s32.totalorder %s308, 63
        %s310 = scalar_select %p309, %s308, 63
        %s311 = smul.addr %s310, 8
        %s312 = scalar_lea.vmem %s7, %s311
        %s313 = smul.u32 32, %s22
        %v315 = vld [vmem:[%s272] sm:$0xff]
        %v316 = vld [vmem:[%s272 + $0x8] sm:$0xff]
        %v317 = vld [vmem:[%s272 + $0x10] sm:$0xff]
        %v318 = vld [vmem:[%s272 + $0x18] sm:$0xff]
        %v319 = vld [vmem:[%s272 + $0x20] sm:$0xff]
        %v320 = vld [vmem:[%s272 + $0x28] sm:$0xff]
        %v321 = vld [vmem:[%s272 + $0x30] sm:$0xff]
        %v322 = vld [vmem:[%s272 + $0x38] sm:$0xff]
        %v323 = vld [vmem:[%s272 + $0x40] sm:$0xff]
        %v324 = vld [vmem:[%s272 + $0x48] sm:$0xff]
        %v325 = vld [vmem:[%s272 + $0x50] sm:$0xff]
        %v326 = vld [vmem:[%s272 + $0x58] sm:$0xff]
        %v327 = vld [vmem:[%s272 + $0x60] sm:$0xff]
        %v328 = vld [vmem:[%s272 + $0x68] sm:$0xff]
        %v329 = vld [vmem:[%s272 + $0x70] sm:$0xff]
        %v330 = vld [vmem:[%s272 + $0x78] sm:$0xff]
        %v331 = vld [vmem:[%s272 + $0x80] sm:$0xff]
        %v332 = vld [vmem:[%s272 + $0x88] sm:$0xff]
        %v333 = vld [vmem:[%s272 + $0x90] sm:$0xff]
        %v334 = vld [vmem:[%s272 + $0x98] sm:$0xff]
        %v335 = vld [vmem:[%s272 + $0xa0] sm:$0xff]
        %v336 = vld [vmem:[%s272 + $0xa8] sm:$0xff]
        %v337 = vld [vmem:[%s272 + $0xb0] sm:$0xff]
        %v338 = vld [vmem:[%s272 + $0xb8] sm:$0xff]
        %v339 = vld [vmem:[%s272 + $0xc0] sm:$0xff]
        %v340 = vld [vmem:[%s272 + $0xc8] sm:$0xff]
        %v341 = vld [vmem:[%s272 + $0xd0] sm:$0xff]
        %v342 = vld [vmem:[%s272 + $0xd8] sm:$0xff]
        %v343 = vld [vmem:[%s272 + $0xe0] sm:$0xff]
        %v344 = vld [vmem:[%s272 + $0xe8] sm:$0xff]
        %v345 = vld [vmem:[%s272 + $0xf0] sm:$0xff]
        %v346 = vld [vmem:[%s272 + $0xf8] sm:$0xff]
        %v347 = vpack.c.bf16 %v316, %v315
        %v348 = vpack.c.bf16 %v318, %v317
        %v349 = vpack.c.bf16 %v320, %v319
        %v350 = vpack.c.bf16 %v322, %v321
        %v351 = vpack.c.bf16 %v324, %v323
        %v352 = vpack.c.bf16 %v326, %v325
        %v353 = vpack.c.bf16 %v328, %v327
        %v354 = vpack.c.bf16 %v330, %v329
        %v355 = vpack.c.bf16 %v332, %v331
        %v356 = vpack.c.bf16 %v334, %v333
        %v357 = vpack.c.bf16 %v336, %v335
        %v358 = vpack.c.bf16 %v338, %v337
        %v359 = vpack.c.bf16 %v340, %v339
        %v360 = vpack.c.bf16 %v342, %v341
        %v361 = vpack.c.bf16 %v344, %v343
        %v362 = vpack.c.bf16 %v346, %v345
        %v363 = vld [vmem:[%s1] sm:$0xf]
        %v364 = vld [vmem:[%s1 + $0x4] sm:$0xf]
        %v365 = vld [vmem:[%s2] sm:$0x1]
        %v366 = vunpack.c.l.bf16 %v365
        %v367 = vlaneseq
        %v368 = vshrl.u32 %v367, 7
        %v369 = vsub.s32 0, %v368
        %v370 = vrot.slane %v366, %v369
        %v373 = vunpack.c.l.b16 %v363
        %v374 = vunpack.c.l.b16 %v364
        %v375 = vpack.c.b16 %v374, %v373
        %vm377 = vcmask 130048
        %v379 = vsel %vm377, %v347, 0
        %v382 = vsel %vm377, %v348, 0
        %v385 = vsel %vm377, %v349, 0
        %v388 = vsel %vm377, %v350, 0
        %v391 = vsel %vm377, %v351, 0
        %v394 = vsel %vm377, %v352, 0
        %v397 = vsel %vm377, %v353, 0
        %v400 = vsel %vm377, %v354, 0
        %v403 = vsel %vm377, %v355, 0
        %v406 = vsel %vm377, %v356, 0
        %v409 = vsel %vm377, %v357, 0
        %v412 = vsel %vm377, %v358, 0
        %v415 = vsel %vm377, %v359, 0
        %v418 = vsel %vm377, %v360, 0
        %v421 = vsel %vm377, %v361, 0
        %v424 = vsel %vm377, %v362, 0
        %426 = vmatprep.subr.bf16.mxu0 0
        %427 = vmatpush1.bf16.msra.mxu0 0
        %428 = vmatprep.subr.bf16.mxu0 0
        %429 = vmatpush1.bf16.msra.mxu0 0
        %430 = vmatprep.subr.bf16.mxu0 0
        %431 = vmatpush1.bf16.msra.mxu0 0
        %432 = vmatprep.subr.bf16.mxu0 0
        %433 = vmatpush1.bf16.msra.mxu0 0
        %434 = vmatprep.subr.bf16.mxu0 0
        %435 = vmatpush1.bf16.msra.mxu0 0
        %436 = vmatprep.subr.bf16.mxu0 0
        %437 = vmatpush1.bf16.msra.mxu0 0
        %438 = vmatprep.subr.bf16.mxu0 0
        %439 = vmatpush1.bf16.msra.mxu0 0
        %440 = vmatprep.subr.bf16.mxu0 0
        %441 = vmatpush1.bf16.msra.mxu0 %v375
        %442 = vmatprep.subr.bf16.mxu0 0
        %443 = vmatpush2.bf16.msra.mxu0 0
        %444 = vmatprep.subr.bf16.mxu0 0
        %445 = vmatpush2.bf16.msra.mxu0 0
        %446 = vmatprep.subr.bf16.mxu0 0
        %447 = vmatpush2.bf16.msra.mxu0 0
        %448 = vmatprep.subr.bf16.mxu0 0
        %449 = vmatpush2.bf16.msra.mxu0 0
        %450 = vmatprep.subr.bf16.mxu0 0
        %451 = vmatpush2.bf16.msra.mxu0 0
        %452 = vmatprep.subr.bf16.mxu0 0
        %453 = vmatpush2.bf16.msra.mxu0 0
        %454 = vmatprep.subr.bf16.mxu0 0
        %455 = vmatpush2.bf16.msra.mxu0 0
        %456 = vmatprep.subr.bf16.mxu0 0
        %457 = vmatpush2.bf16.msra.mxu0 0
        %458 = vmatprep.mubr.bf16.mxu0 0
        %459 = vmatmul.mubr.bf16.gmra.mxu0 %v379
        %v460 = vpop.f32.mrf.mxu0
        %v461 = vadd.f32 %v370, %v460
        %v462 = vpop.f32.mrf.mxu0
        %v463 = vpop.f32.mrf.mxu0
        %v464 = vadd.f32 %v370, %v463
        %v465 = vpop.f32.mrf.mxu0
        %466 = vmatprep.mubr.bf16.mxu0 0
        %467 = vmatmul.mubr.bf16.gmra.mxu0 %v382
        %v468 = vpop.f32.mrf.mxu0
        %v469 = vadd.f32 %v370, %v468
        %v470 = vpop.f32.mrf.mxu0
        %v471 = vpop.f32.mrf.mxu0
        %v472 = vadd.f32 %v370, %v471
        %v473 = vpop.f32.mrf.mxu0
        %474 = vmatprep.mubr.bf16.mxu0 0
        %475 = vmatmul.mubr.bf16.gmra.mxu0 %v385
        %v476 = vpop.f32.mrf.mxu0
        %v477 = vadd.f32 %v370, %v476
        %v478 = vpop.f32.mrf.mxu0
        %v479 = vpop.f32.mrf.mxu0
        %v480 = vadd.f32 %v370, %v479
        %v481 = vpop.f32.mrf.mxu0
        %482 = vmatprep.mubr.bf16.mxu0 0
        %483 = vmatmul.mubr.bf16.gmra.mxu0 %v388
        %v484 = vpop.f32.mrf.mxu0
        %v485 = vadd.f32 %v370, %v484
        %v486 = vpop.f32.mrf.mxu0
        %v487 = vpop.f32.mrf.mxu0
        %v488 = vadd.f32 %v370, %v487
        %v489 = vpop.f32.mrf.mxu0
        %490 = vmatprep.mubr.bf16.mxu0 0
        %491 = vmatmul.mubr.bf16.gmra.mxu0 %v391
        %v492 = vpop.f32.mrf.mxu0
        %v493 = vadd.f32 %v370, %v492
        %v494 = vpop.f32.mrf.mxu0
        %v495 = vpop.f32.mrf.mxu0
        %v496 = vadd.f32 %v370, %v495
        %v497 = vpop.f32.mrf.mxu0
        %498 = vmatprep.mubr.bf16.mxu0 0
        %499 = vmatmul.mubr.bf16.gmra.mxu0 %v394
        %v500 = vpop.f32.mrf.mxu0
        %v501 = vadd.f32 %v370, %v500
        %v502 = vpop.f32.mrf.mxu0
        %v503 = vpop.f32.mrf.mxu0
        %v504 = vadd.f32 %v370, %v503
        %v505 = vpop.f32.mrf.mxu0
        %506 = vmatprep.mubr.bf16.mxu0 0
        %507 = vmatmul.mubr.bf16.gmra.mxu0 %v397
        %v508 = vpop.f32.mrf.mxu0
        %v509 = vadd.f32 %v370, %v508
        %v510 = vpop.f32.mrf.mxu0
        %v511 = vpop.f32.mrf.mxu0
        %v512 = vadd.f32 %v370, %v511
        %v513 = vpop.f32.mrf.mxu0
        %514 = vmatprep.mubr.bf16.mxu0 0
        %515 = vmatmul.mubr.bf16.gmra.mxu0 %v400
        %v516 = vpop.f32.mrf.mxu0
        %v517 = vadd.f32 %v370, %v516
        %v518 = vpop.f32.mrf.mxu0
        %v519 = vpop.f32.mrf.mxu0
        %v520 = vadd.f32 %v370, %v519
        %v521 = vpop.f32.mrf.mxu0
        %522 = vmatprep.mubr.bf16.mxu0 0
        %523 = vmatmul.mubr.bf16.gmra.mxu0 %v403
        %v524 = vpop.f32.mrf.mxu0
        %v525 = vadd.f32 %v370, %v524
        %v526 = vpop.f32.mrf.mxu0
        %v527 = vpop.f32.mrf.mxu0
        %v528 = vadd.f32 %v370, %v527
        %v529 = vpop.f32.mrf.mxu0
        %530 = vmatprep.mubr.bf16.mxu0 0
        %531 = vmatmul.mubr.bf16.gmra.mxu0 %v406
        %v532 = vpop.f32.mrf.mxu0
        %v533 = vadd.f32 %v370, %v532
        %v534 = vpop.f32.mrf.mxu0
        %v535 = vpop.f32.mrf.mxu0
        %v536 = vadd.f32 %v370, %v535
        %v537 = vpop.f32.mrf.mxu0
        %538 = vmatprep.mubr.bf16.mxu0 0
        %539 = vmatmul.mubr.bf16.gmra.mxu0 %v409
        %v540 = vpop.f32.mrf.mxu0
        %v541 = vadd.f32 %v370, %v540
        %v542 = vpop.f32.mrf.mxu0
        %v543 = vpop.f32.mrf.mxu0
        %v544 = vadd.f32 %v370, %v543
        %v545 = vpop.f32.mrf.mxu0
        %546 = vmatprep.mubr.bf16.mxu0 0
        %547 = vmatmul.mubr.bf16.gmra.mxu0 %v412
        %v548 = vpop.f32.mrf.mxu0
        %v549 = vadd.f32 %v370, %v548
        %v550 = vpop.f32.mrf.mxu0
        %v551 = vpop.f32.mrf.mxu0
        %v552 = vadd.f32 %v370, %v551
        %v553 = vpop.f32.mrf.mxu0
        %554 = vmatprep.mubr.bf16.mxu0 0
        %555 = vmatmul.mubr.bf16.gmra.mxu0 %v415
        %v556 = vpop.f32.mrf.mxu0
        %v557 = vadd.f32 %v370, %v556
        %v558 = vpop.f32.mrf.mxu0
        %v559 = vpop.f32.mrf.mxu0
        %v560 = vadd.f32 %v370, %v559
        %v561 = vpop.f32.mrf.mxu0
        %562 = vmatprep.mubr.bf16.mxu0 0
        %563 = vmatmul.mubr.bf16.gmra.mxu0 %v418
        %v564 = vpop.f32.mrf.mxu0
        %v565 = vadd.f32 %v370, %v564
        %v566 = vpop.f32.mrf.mxu0
        %v567 = vpop.f32.mrf.mxu0
        %v568 = vadd.f32 %v370, %v567
        %v569 = vpop.f32.mrf.mxu0
        %570 = vmatprep.mubr.bf16.mxu0 0
        %571 = vmatmul.mubr.bf16.gmra.mxu0 %v421
        %v572 = vpop.f32.mrf.mxu0
        %v573 = vadd.f32 %v370, %v572
        %v574 = vpop.f32.mrf.mxu0
        %v575 = vpop.f32.mrf.mxu0
        %v576 = vadd.f32 %v370, %v575
        %v577 = vpop.f32.mrf.mxu0
        %578 = vmatprep.mubr.bf16.mxu0 0
        %579 = vmatmul.mubr.bf16.gmra.mxu0 %v424
        %v580 = vpop.f32.mrf.mxu0
        %v581 = vadd.f32 %v370, %v580
        %v582 = vpop.f32.mrf.mxu0
        %v583 = vpop.f32.mrf.mxu0
        %v584 = vadd.f32 %v370, %v583
        %v585 = vpop.f32.mrf.mxu0
        %586 = vdwg.mxu0
        %v587 = vmax.f32 %v461, 0.0
        %v588 = vmax.f32 %v464, 0.0
        %v589 = vmax.f32 %v469, 0.0
        %v590 = vmax.f32 %v472, 0.0
        %v591 = vmax.f32 %v477, 0.0
        %v592 = vmax.f32 %v480, 0.0
        %v593 = vmax.f32 %v485, 0.0
        %v594 = vmax.f32 %v488, 0.0
        %v595 = vmax.f32 %v493, 0.0
        %v596 = vmax.f32 %v496, 0.0
        %v597 = vmax.f32 %v501, 0.0
        %v598 = vmax.f32 %v504, 0.0
        %v599 = vmax.f32 %v509, 0.0
        %v600 = vmax.f32 %v512, 0.0
        %v601 = vmax.f32 %v517, 0.0
        %v602 = vmax.f32 %v520, 0.0
        %v603 = vmax.f32 %v525, 0.0
        %v604 = vmax.f32 %v528, 0.0
        %v605 = vmax.f32 %v533, 0.0
        %v606 = vmax.f32 %v536, 0.0
        %v607 = vmax.f32 %v541, 0.0
        %v608 = vmax.f32 %v544, 0.0
        %v609 = vmax.f32 %v549, 0.0
        %v610 = vmax.f32 %v552, 0.0
        %v611 = vmax.f32 %v557, 0.0
        %v612 = vmax.f32 %v560, 0.0
        %v613 = vmax.f32 %v565, 0.0
        %v614 = vmax.f32 %v568, 0.0
        %v615 = vmax.f32 %v573, 0.0
        %v616 = vmax.f32 %v576, 0.0
        %v617 = vmax.f32 %v581, 0.0
        %v618 = vmax.f32 %v584, 0.0
        %v619 = vpack.c.bf16 %v588, %v587
        %v620 = vpack.c.bf16 %v590, %v589
        %v621 = vpack.c.bf16 %v592, %v591
        %v622 = vpack.c.bf16 %v594, %v593
        %v623 = vpack.c.bf16 %v596, %v595
        %v624 = vpack.c.bf16 %v598, %v597
        %v625 = vpack.c.bf16 %v600, %v599
        %v626 = vpack.c.bf16 %v602, %v601
        %v627 = vpack.c.bf16 %v604, %v603
        %v628 = vpack.c.bf16 %v606, %v605
        %v629 = vpack.c.bf16 %v608, %v607
        %v630 = vpack.c.bf16 %v610, %v609
        %v631 = vpack.c.bf16 %v612, %v611
        %v632 = vpack.c.bf16 %v614, %v613
        %v633 = vpack.c.bf16 %v616, %v615
        %v634 = vpack.c.bf16 %v618, %v617
        %v635 = vld [vmem:[%s3] sm:$0xf]
        %v636 = vld [vmem:[%s3 + $0x4] sm:$0xf]
        %v637 = vld [vmem:[%s3 + $0x8] sm:$0xf]
        %v638 = vld [vmem:[%s3 + $0xc] sm:$0xf]
        %v639 = vld [vmem:[%s3 + $0x10] sm:$0xf]
        %v640 = vld [vmem:[%s3 + $0x14] sm:$0xf]
        %v641 = vld [vmem:[%s3 + $0x18] sm:$0xf]
        %v642 = vld [vmem:[%s3 + $0x1c] sm:$0xf]
        %v643 = vld [vmem:[%s3 + $0x20] sm:$0xf]
        %v644 = vld [vmem:[%s3 + $0x24] sm:$0xf]
        %v645 = vld [vmem:[%s3 + $0x28] sm:$0xf]
        %v646 = vld [vmem:[%s3 + $0x2c] sm:$0xf]
        %v647 = vld [vmem:[%s3 + $0x30] sm:$0xf]
        %v648 = vld [vmem:[%s3 + $0x34] sm:$0xf]
        %v649 = vld [vmem:[%s3 + $0x38] sm:$0xf]
        %v650 = vld [vmem:[%s3 + $0x3c] sm:$0xf]
        %v651 = vld [vmem:[#allocation4] sm:$0x1]
        %v652 = vunpack.c.l.bf16 %v651
        %v653 = vlaneseq
        %v654 = vshrl.u32 %v653, 7
        %v655 = vsub.s32 0, %v654
        %v656 = vrot.slane %v652, %v655
        %v673 = vunpack.c.l.b16 %v635
        %v674 = vunpack.c.l.b16 %v636
        %v675 = vunpack.c.l.b16 %v637
        %v676 = vunpack.c.l.b16 %v638
        %v677 = vunpack.c.l.b16 %v639
        %v678 = vunpack.c.l.b16 %v640
        %v679 = vunpack.c.l.b16 %v641
        %v680 = vunpack.c.l.b16 %v642
        %v681 = vunpack.c.l.b16 %v643
        %v682 = vunpack.c.l.b16 %v644
        %v683 = vunpack.c.l.b16 %v645
        %v684 = vunpack.c.l.b16 %v646
        %v685 = vunpack.c.l.b16 %v647
        %v686 = vunpack.c.l.b16 %v648
        %v687 = vunpack.c.l.b16 %v649
        %v688 = vunpack.c.l.b16 %v650
        %v689 = vpack.c.b16 %v674, %v673
        %v690 = vpack.c.b16 %v676, %v675
        %v691 = vpack.c.b16 %v678, %v677
        %v692 = vpack.c.b16 %v680, %v679
        %v693 = vpack.c.b16 %v682, %v681
        %v694 = vpack.c.b16 %v684, %v683
        %v695 = vpack.c.b16 %v686, %v685
        %v696 = vpack.c.b16 %v688, %v687
        %705 = vmatprep.subr.bf16.mxu0 0
        %706 = vmatpush1.bf16.msra.mxu0 %v696
        %707 = vmatprep.subr.bf16.mxu0 0
        %708 = vmatpush1.bf16.msra.mxu0 %v695
        %709 = vmatprep.subr.bf16.mxu0 0
        %710 = vmatpush1.bf16.msra.mxu0 %v694
        %711 = vmatprep.subr.bf16.mxu0 0
        %712 = vmatpush1.bf16.msra.mxu0 %v693
        %713 = vmatprep.subr.bf16.mxu0 0
        %714 = vmatpush1.bf16.msra.mxu0 %v692
        %715 = vmatprep.subr.bf16.mxu0 0
        %716 = vmatpush1.bf16.msra.mxu0 %v691
        %717 = vmatprep.subr.bf16.mxu0 0
        %718 = vmatpush1.bf16.msra.mxu0 %v690
        %719 = vmatprep.subr.bf16.mxu0 0
        %720 = vmatpush1.bf16.msra.mxu0 %v689
        %721 = vmatprep.subr.bf16.mxu0 0
        %722 = vmatpush2.bf16.msra.mxu0 0
        %723 = vmatprep.subr.bf16.mxu0 0
        %724 = vmatpush2.bf16.msra.mxu0 0
        %725 = vmatprep.subr.bf16.mxu0 0
        %726 = vmatpush2.bf16.msra.mxu0 0
        %727 = vmatprep.subr.bf16.mxu0 0
        %728 = vmatpush2.bf16.msra.mxu0 0
        %729 = vmatprep.subr.bf16.mxu0 0
        %730 = vmatpush2.bf16.msra.mxu0 0
        %731 = vmatprep.subr.bf16.mxu0 0
        %732 = vmatpush2.bf16.msra.mxu0 0
        %733 = vmatprep.subr.bf16.mxu0 0
        %734 = vmatpush2.bf16.msra.mxu0 0
        %735 = vmatprep.subr.bf16.mxu0 0
        %736 = vmatpush2.bf16.msra.mxu0 0
        %737 = vmatprep.mubr.bf16.mxu0 0
        %738 = vmatmul.mubr.bf16.gmra.mxu0 %v619
        %v739 = vpop.f32.mrf.mxu0
        %v740 = vadd.f32 %v656, %v739
        %v741 = vpop.f32.mrf.mxu0
        %v742 = vpop.f32.mrf.mxu0
        %v743 = vadd.f32 %v656, %v742
        %v744 = vpop.f32.mrf.mxu0
        %745 = vmatprep.mubr.bf16.mxu0 0
        %746 = vmatmul.mubr.bf16.gmra.mxu0 %v620
        %v747 = vpop.f32.mrf.mxu0
        %v748 = vadd.f32 %v656, %v747
        %v749 = vpop.f32.mrf.mxu0
        %v750 = vpop.f32.mrf.mxu0
        %v751 = vadd.f32 %v656, %v750
        %v752 = vpop.f32.mrf.mxu0
        %753 = vmatprep.mubr.bf16.mxu0 0
        %754 = vmatmul.mubr.bf16.gmra.mxu0 %v621
        %v755 = vpop.f32.mrf.mxu0
        %v756 = vadd.f32 %v656, %v755
        %v757 = vpop.f32.mrf.mxu0
        %v758 = vpop.f32.mrf.mxu0
        %v759 = vadd.f32 %v656, %v758
        %v760 = vpop.f32.mrf.mxu0
        %761 = vmatprep.mubr.bf16.mxu0 0
        %762 = vmatmul.mubr.bf16.gmra.mxu0 %v622
        %v763 = vpop.f32.mrf.mxu0
        %v764 = vadd.f32 %v656, %v763
        %v765 = vpop.f32.mrf.mxu0
        %v766 = vpop.f32.mrf.mxu0
        %v767 = vadd.f32 %v656, %v766
        %v768 = vpop.f32.mrf.mxu0
        %769 = vmatprep.mubr.bf16.mxu0 0
        %770 = vmatmul.mubr.bf16.gmra.mxu0 %v623
        %v771 = vpop.f32.mrf.mxu0
        %v772 = vadd.f32 %v656, %v771
        %v773 = vpop.f32.mrf.mxu0
        %v774 = vpop.f32.mrf.mxu0
        %v775 = vadd.f32 %v656, %v774
        %v776 = vpop.f32.mrf.mxu0
        %777 = vmatprep.mubr.bf16.mxu0 0
        %778 = vmatmul.mubr.bf16.gmra.mxu0 %v624
        %v779 = vpop.f32.mrf.mxu0
        %v780 = vadd.f32 %v656, %v779
        %v781 = vpop.f32.mrf.mxu0
        %v782 = vpop.f32.mrf.mxu0
        %v783 = vadd.f32 %v656, %v782
        %v784 = vpop.f32.mrf.mxu0
        %785 = vmatprep.mubr.bf16.mxu0 0
        %786 = vmatmul.mubr.bf16.gmra.mxu0 %v625
        %v787 = vpop.f32.mrf.mxu0
        %v788 = vadd.f32 %v656, %v787
        %v789 = vpop.f32.mrf.mxu0
        %v790 = vpop.f32.mrf.mxu0
        %v791 = vadd.f32 %v656, %v790
        %v792 = vpop.f32.mrf.mxu0
        %793 = vmatprep.mubr.bf16.mxu0 0
        %794 = vmatmul.mubr.bf16.gmra.mxu0 %v626
        %v795 = vpop.f32.mrf.mxu0
        %v796 = vadd.f32 %v656, %v795
        %v797 = vpop.f32.mrf.mxu0
        %v798 = vpop.f32.mrf.mxu0
        %v799 = vadd.f32 %v656, %v798
        %v800 = vpop.f32.mrf.mxu0
        %801 = vmatprep.mubr.bf16.mxu0 0
        %802 = vmatmul.mubr.bf16.gmra.mxu0 %v627
        %v803 = vpop.f32.mrf.mxu0
        %v804 = vadd.f32 %v656, %v803
        %v805 = vpop.f32.mrf.mxu0
        %v806 = vpop.f32.mrf.mxu0
        %v807 = vadd.f32 %v656, %v806
        %v808 = vpop.f32.mrf.mxu0
        %809 = vmatprep.mubr.bf16.mxu0 0
        %810 = vmatmul.mubr.bf16.gmra.mxu0 %v628
        %v811 = vpop.f32.mrf.mxu0
        %v812 = vadd.f32 %v656, %v811
        %v813 = vpop.f32.mrf.mxu0
        %v814 = vpop.f32.mrf.mxu0
        %v815 = vadd.f32 %v656, %v814
        %v816 = vpop.f32.mrf.mxu0
        %817 = vmatprep.mubr.bf16.mxu0 0
        %818 = vmatmul.mubr.bf16.gmra.mxu0 %v629
        %v819 = vpop.f32.mrf.mxu0
        %v820 = vadd.f32 %v656, %v819
        %v821 = vpop.f32.mrf.mxu0
        %v822 = vpop.f32.mrf.mxu0
        %v823 = vadd.f32 %v656, %v822
        %v824 = vpop.f32.mrf.mxu0
        %825 = vmatprep.mubr.bf16.mxu0 0
        %826 = vmatmul.mubr.bf16.gmra.mxu0 %v630
        %v827 = vpop.f32.mrf.mxu0
        %v828 = vadd.f32 %v656, %v827
        %v829 = vpop.f32.mrf.mxu0
        %v830 = vpop.f32.mrf.mxu0
        %v831 = vadd.f32 %v656, %v830
        %v832 = vpop.f32.mrf.mxu0
        %833 = vmatprep.mubr.bf16.mxu0 0
        %834 = vmatmul.mubr.bf16.gmra.mxu0 %v631
        %v835 = vpop.f32.mrf.mxu0
        %v836 = vadd.f32 %v656, %v835
        %v837 = vpop.f32.mrf.mxu0
        %v838 = vpop.f32.mrf.mxu0
        %v839 = vadd.f32 %v656, %v838
        %v840 = vpop.f32.mrf.mxu0
        %841 = vmatprep.mubr.bf16.mxu0 0
        %842 = vmatmul.mubr.bf16.gmra.mxu0 %v632
        %v843 = vpop.f32.mrf.mxu0
        %v844 = vadd.f32 %v656, %v843
        %v845 = vpop.f32.mrf.mxu0
        %v846 = vpop.f32.mrf.mxu0
        %v847 = vadd.f32 %v656, %v846
        %v848 = vpop.f32.mrf.mxu0
        %849 = vmatprep.mubr.bf16.mxu0 0
        %850 = vmatmul.mubr.bf16.gmra.mxu0 %v633
        %v851 = vpop.f32.mrf.mxu0
        %v852 = vadd.f32 %v656, %v851
        %v853 = vpop.f32.mrf.mxu0
        %v854 = vpop.f32.mrf.mxu0
        %v855 = vadd.f32 %v656, %v854
        %v856 = vpop.f32.mrf.mxu0
        %857 = vmatprep.mubr.bf16.mxu0 0
        %858 = vmatmul.mubr.bf16.gmra.mxu0 %v634
        %v859 = vpop.f32.mrf.mxu0
        %v860 = vadd.f32 %v656, %v859
        %v861 = vpop.f32.mrf.mxu0
        %v862 = vpop.f32.mrf.mxu0
        %v863 = vadd.f32 %v656, %v862
        %v864 = vpop.f32.mrf.mxu0
        %865 = vdwg.mxu0
        %v866 = vmax.f32 %v740, 0.0
        %v867 = vmax.f32 %v743, 0.0
        %v868 = vmax.f32 %v748, 0.0
        %v869 = vmax.f32 %v751, 0.0
        %v870 = vmax.f32 %v756, 0.0
        %v871 = vmax.f32 %v759, 0.0
        %v872 = vmax.f32 %v764, 0.0
        %v873 = vmax.f32 %v767, 0.0
        %v874 = vmax.f32 %v772, 0.0
        %v875 = vmax.f32 %v775, 0.0
        %v876 = vmax.f32 %v780, 0.0
        %v877 = vmax.f32 %v783, 0.0
        %v878 = vmax.f32 %v788, 0.0
        %v879 = vmax.f32 %v791, 0.0
        %v880 = vmax.f32 %v796, 0.0
        %v881 = vmax.f32 %v799, 0.0
        %v882 = vmax.f32 %v804, 0.0
        %v883 = vmax.f32 %v807, 0.0
        %v884 = vmax.f32 %v812, 0.0
        %v885 = vmax.f32 %v815, 0.0
        %v886 = vmax.f32 %v820, 0.0
        %v887 = vmax.f32 %v823, 0.0
        %v888 = vmax.f32 %v828, 0.0
        %v889 = vmax.f32 %v831, 0.0
        %v890 = vmax.f32 %v836, 0.0
        %v891 = vmax.f32 %v839, 0.0
        %v892 = vmax.f32 %v844, 0.0
        %v893 = vmax.f32 %v847, 0.0
        %v894 = vmax.f32 %v852, 0.0
        %v895 = vmax.f32 %v855, 0.0
        %v896 = vmax.f32 %v860, 0.0
        %v897 = vmax.f32 %v863, 0.0
        %v898 = vpack.c.bf16 %v867, %v866
        %v899 = vpack.c.bf16 %v869, %v868
        %v900 = vpack.c.bf16 %v871, %v870
        %v901 = vpack.c.bf16 %v873, %v872
        %v902 = vpack.c.bf16 %v875, %v874
        %v903 = vpack.c.bf16 %v877, %v876
        %v904 = vpack.c.bf16 %v879, %v878
        %v905 = vpack.c.bf16 %v881, %v880
        %v906 = vpack.c.bf16 %v883, %v882
        %v907 = vpack.c.bf16 %v885, %v884
        %v908 = vpack.c.bf16 %v887, %v886
        %v909 = vpack.c.bf16 %v889, %v888
        %v910 = vpack.c.bf16 %v891, %v890
        %v911 = vpack.c.bf16 %v893, %v892
        %v912 = vpack.c.bf16 %v895, %v894
        %v913 = vpack.c.bf16 %v897, %v896
        %v914 = vld [vmem:[%s5] sm:$0xf]
        %v915 = vld [vmem:[%s5 + $0x4] sm:$0xf]
        %v916 = vld [vmem:[%s5 + $0x8] sm:$0xf]
        %v917 = vld [vmem:[%s5 + $0xc] sm:$0xf]
        %v918 = vld [vmem:[%s5 + $0x10] sm:$0xf]
        %v919 = vld [vmem:[%s5 + $0x14] sm:$0xf]
        %v920 = vld [vmem:[%s5 + $0x18] sm:$0xf]
        %v921 = vld [vmem:[%s5 + $0x1c] sm:$0xf]
        %v922 = vld [vmem:[%s5 + $0x20] sm:$0xf]
        %v923 = vld [vmem:[%s5 + $0x24] sm:$0xf]
        %v924 = vld [vmem:[%s5 + $0x28] sm:$0xf]
        %v925 = vld [vmem:[%s5 + $0x2c] sm:$0xf]
        %v926 = vld [vmem:[%s5 + $0x30] sm:$0xf]
        %v927 = vld [vmem:[%s5 + $0x34] sm:$0xf]
        %v928 = vld [vmem:[%s5 + $0x38] sm:$0xf]
        %v929 = vld [vmem:[%s5 + $0x3c] sm:$0xf]
        %v930 = vld [vmem:[%s6] sm:$0x1]
        %v931 = vunpack.c.l.bf16 %v930
        %v932 = vlaneseq
        %v933 = vshrl.u32 %v932, 7
        %v934 = vsub.s32 0, %v933
        %v935 = vrot.slane %v931, %v934
        %v952 = vunpack.c.l.b16 %v914
        %v953 = vunpack.c.l.b16 %v915
        %v954 = vunpack.c.l.b16 %v916
        %v955 = vunpack.c.l.b16 %v917
        %v956 = vunpack.c.l.b16 %v918
        %v957 = vunpack.c.l.b16 %v919
        %v958 = vunpack.c.l.b16 %v920
        %v959 = vunpack.c.l.b16 %v921
        %v960 = vunpack.c.l.b16 %v922
        %v961 = vunpack.c.l.b16 %v923
        %v962 = vunpack.c.l.b16 %v924
        %v963 = vunpack.c.l.b16 %v925
        %v964 = vunpack.c.l.b16 %v926
        %v965 = vunpack.c.l.b16 %v927
        %v966 = vunpack.c.l.b16 %v928
        %v967 = vunpack.c.l.b16 %v929
        %v968 = vpack.c.b16 %v953, %v952
        %v969 = vpack.c.b16 %v955, %v954
        %v970 = vpack.c.b16 %v957, %v956
        %v971 = vpack.c.b16 %v959, %v958
        %v972 = vpack.c.b16 %v961, %v960
        %v973 = vpack.c.b16 %v963, %v962
        %v974 = vpack.c.b16 %v965, %v964
        %v975 = vpack.c.b16 %v967, %v966
        %984 = vmatprep.subr.bf16.mxu0 0
        %985 = vmatpush1.bf16.msra.mxu0 %v975
        %986 = vmatprep.subr.bf16.mxu0 0
        %987 = vmatpush1.bf16.msra.mxu0 %v974
        %988 = vmatprep.subr.bf16.mxu0 0
        %989 = vmatpush1.bf16.msra.mxu0 %v973
        %990 = vmatprep.subr.bf16.mxu0 0
        %991 = vmatpush1.bf16.msra.mxu0 %v972
        %992 = vmatprep.subr.bf16.mxu0 0
        %993 = vmatpush1.bf16.msra.mxu0 %v971
        %994 = vmatprep.subr.bf16.mxu0 0
        %995 = vmatpush1.bf16.msra.mxu0 %v970
        %996 = vmatprep.subr.bf16.mxu0 0
        %997 = vmatpush1.bf16.msra.mxu0 %v969
        %998 = vmatprep.subr.bf16.mxu0 0
        %999 = vmatpush1.bf16.msra.mxu0 %v968
        %1000 = vmatprep.subr.bf16.mxu0 0
        %1001 = vmatpush2.bf16.msra.mxu0 0
        %1002 = vmatprep.subr.bf16.mxu0 0
        %1003 = vmatpush2.bf16.msra.mxu0 0
        %1004 = vmatprep.subr.bf16.mxu0 0
        %1005 = vmatpush2.bf16.msra.mxu0 0
        %1006 = vmatprep.subr.bf16.mxu0 0
        %1007 = vmatpush2.bf16.msra.mxu0 0
        %1008 = vmatprep.subr.bf16.mxu0 0
        %1009 = vmatpush2.bf16.msra.mxu0 0
        %1010 = vmatprep.subr.bf16.mxu0 0
        %1011 = vmatpush2.bf16.msra.mxu0 0
        %1012 = vmatprep.subr.bf16.mxu0 0
        %1013 = vmatpush2.bf16.msra.mxu0 0
        %1014 = vmatprep.subr.bf16.mxu0 0
        %1015 = vmatpush2.bf16.msra.mxu0 0
        %1016 = vmatprep.mubr.bf16.mxu0 0
        %1017 = vmatmul.mubr.bf16.gmra.mxu0 %v898
        %v1018 = vpop.f32.mrf.mxu0
        %v1019 = vadd.f32 %v935, %v1018
        %v1020 = vpop.f32.mrf.mxu0
        %v1021 = vpop.f32.mrf.mxu0
        %v1022 = vadd.f32 %v935, %v1021
        %v1023 = vpop.f32.mrf.mxu0
        %1024 = vmatprep.mubr.bf16.mxu0 0
        %1025 = vmatmul.mubr.bf16.gmra.mxu0 %v899
        %v1026 = vpop.f32.mrf.mxu0
        %v1027 = vadd.f32 %v935, %v1026
        %v1028 = vpop.f32.mrf.mxu0
        %v1029 = vpop.f32.mrf.mxu0
        %v1030 = vadd.f32 %v935, %v1029
        %v1031 = vpop.f32.mrf.mxu0
        %1032 = vmatprep.mubr.bf16.mxu0 0
        %1033 = vmatmul.mubr.bf16.gmra.mxu0 %v900
        %v1034 = vpop.f32.mrf.mxu0
        %v1035 = vadd.f32 %v935, %v1034
        %v1036 = vpop.f32.mrf.mxu0
        %v1037 = vpop.f32.mrf.mxu0
        %v1038 = vadd.f32 %v935, %v1037
        %v1039 = vpop.f32.mrf.mxu0
        %1040 = vmatprep.mubr.bf16.mxu0 0
        %1041 = vmatmul.mubr.bf16.gmra.mxu0 %v901
        %v1042 = vpop.f32.mrf.mxu0
        %v1043 = vadd.f32 %v935, %v1042
        %v1044 = vpop.f32.mrf.mxu0
        %v1045 = vpop.f32.mrf.mxu0
        %v1046 = vadd.f32 %v935, %v1045
        %v1047 = vpop.f32.mrf.mxu0
        %1048 = vmatprep.mubr.bf16.mxu0 0
        %1049 = vmatmul.mubr.bf16.gmra.mxu0 %v902
        %v1050 = vpop.f32.mrf.mxu0
        %v1051 = vadd.f32 %v935, %v1050
        %v1052 = vpop.f32.mrf.mxu0
        %v1053 = vpop.f32.mrf.mxu0
        %v1054 = vadd.f32 %v935, %v1053
        %v1055 = vpop.f32.mrf.mxu0
        %1056 = vmatprep.mubr.bf16.mxu0 0
        %1057 = vmatmul.mubr.bf16.gmra.mxu0 %v903
        %v1058 = vpop.f32.mrf.mxu0
        %v1059 = vadd.f32 %v935, %v1058
        %v1060 = vpop.f32.mrf.mxu0
        %v1061 = vpop.f32.mrf.mxu0
        %v1062 = vadd.f32 %v935, %v1061
        %v1063 = vpop.f32.mrf.mxu0
        %1064 = vmatprep.mubr.bf16.mxu0 0
        %1065 = vmatmul.mubr.bf16.gmra.mxu0 %v904
        %v1066 = vpop.f32.mrf.mxu0
        %v1067 = vadd.f32 %v935, %v1066
        %v1068 = vpop.f32.mrf.mxu0
        %v1069 = vpop.f32.mrf.mxu0
        %v1070 = vadd.f32 %v935, %v1069
        %v1071 = vpop.f32.mrf.mxu0
        %1072 = vmatprep.mubr.bf16.mxu0 0
        %1073 = vmatmul.mubr.bf16.gmra.mxu0 %v905
        %v1074 = vpop.f32.mrf.mxu0
        %v1075 = vadd.f32 %v935, %v1074
        %v1076 = vpop.f32.mrf.mxu0
        %v1077 = vpop.f32.mrf.mxu0
        %v1078 = vadd.f32 %v935, %v1077
        %v1079 = vpop.f32.mrf.mxu0
        %1080 = vmatprep.mubr.bf16.mxu0 0
        %1081 = vmatmul.mubr.bf16.gmra.mxu0 %v906
        %v1082 = vpop.f32.mrf.mxu0
        %v1083 = vadd.f32 %v935, %v1082
        %v1084 = vpop.f32.mrf.mxu0
        %v1085 = vpop.f32.mrf.mxu0
        %v1086 = vadd.f32 %v935, %v1085
        %v1087 = vpop.f32.mrf.mxu0
        %1088 = vmatprep.mubr.bf16.mxu0 0
        %1089 = vmatmul.mubr.bf16.gmra.mxu0 %v907
        %v1090 = vpop.f32.mrf.mxu0
        %v1091 = vadd.f32 %v935, %v1090
        %v1092 = vpop.f32.mrf.mxu0
        %v1093 = vpop.f32.mrf.mxu0
        %v1094 = vadd.f32 %v935, %v1093
        %v1095 = vpop.f32.mrf.mxu0
        %1096 = vmatprep.mubr.bf16.mxu0 0
        %1097 = vmatmul.mubr.bf16.gmra.mxu0 %v908
        %v1098 = vpop.f32.mrf.mxu0
        %v1099 = vadd.f32 %v935, %v1098
        %v1100 = vpop.f32.mrf.mxu0
        %v1101 = vpop.f32.mrf.mxu0
        %v1102 = vadd.f32 %v935, %v1101
        %v1103 = vpop.f32.mrf.mxu0
        %1104 = vmatprep.mubr.bf16.mxu0 0
        %1105 = vmatmul.mubr.bf16.gmra.mxu0 %v909
        %v1106 = vpop.f32.mrf.mxu0
        %v1107 = vadd.f32 %v935, %v1106
        %v1108 = vpop.f32.mrf.mxu0
        %v1109 = vpop.f32.mrf.mxu0
        %v1110 = vadd.f32 %v935, %v1109
        %v1111 = vpop.f32.mrf.mxu0
        %1112 = vmatprep.mubr.bf16.mxu0 0
        %1113 = vmatmul.mubr.bf16.gmra.mxu0 %v910
        %v1114 = vpop.f32.mrf.mxu0
        %v1115 = vadd.f32 %v935, %v1114
        %v1116 = vpop.f32.mrf.mxu0
        %v1117 = vpop.f32.mrf.mxu0
        %v1118 = vadd.f32 %v935, %v1117
        %v1119 = vpop.f32.mrf.mxu0
        %1120 = vmatprep.mubr.bf16.mxu0 0
        %1121 = vmatmul.mubr.bf16.gmra.mxu0 %v911
        %v1122 = vpop.f32.mrf.mxu0
        %v1123 = vadd.f32 %v935, %v1122
        %v1124 = vpop.f32.mrf.mxu0
        %v1125 = vpop.f32.mrf.mxu0
        %v1126 = vadd.f32 %v935, %v1125
        %v1127 = vpop.f32.mrf.mxu0
        %1128 = vmatprep.mubr.bf16.mxu0 0
        %1129 = vmatmul.mubr.bf16.gmra.mxu0 %v912
        %v1130 = vpop.f32.mrf.mxu0
        %v1131 = vadd.f32 %v935, %v1130
        %v1132 = vpop.f32.mrf.mxu0
        %v1133 = vpop.f32.mrf.mxu0
        %v1134 = vadd.f32 %v935, %v1133
        %v1135 = vpop.f32.mrf.mxu0
        %1136 = vmatprep.mubr.bf16.mxu0 0
        %1137 = vmatmul.mubr.bf16.gmra.mxu0 %v913
        %v1138 = vpop.f32.mrf.mxu0
        %v1139 = vadd.f32 %v935, %v1138
        %v1140 = vpop.f32.mrf.mxu0
        %v1141 = vpop.f32.mrf.mxu0
        %v1142 = vadd.f32 %v935, %v1141
        %v1143 = vpop.f32.mrf.mxu0
        %1144 = vdwg.mxu0
        %vm1145 = vcmask 64512
        %1146 = vst.msk [vmem:[%s312] sm:$0xff] %vm1145, %v1019
        %1147 = vst.msk [vmem:[%s312 + $0x8] sm:$0xff] %vm1145, %v1022
        %1148 = vst.msk [vmem:[%s312 + $0x10] sm:$0xff] %vm1145, %v1027
        %1149 = vst.msk [vmem:[%s312 + $0x18] sm:$0xff] %vm1145, %v1030
        %1150 = vst.msk [vmem:[%s312 + $0x20] sm:$0xff] %vm1145, %v1035
        %1151 = vst.msk [vmem:[%s312 + $0x28] sm:$0xff] %vm1145, %v1038
        %1152 = vst.msk [vmem:[%s312 + $0x30] sm:$0xff] %vm1145, %v1043
        %1153 = vst.msk [vmem:[%s312 + $0x38] sm:$0xff] %vm1145, %v1046
        %1154 = vst.msk [vmem:[%s312 + $0x40] sm:$0xff] %vm1145, %v1051
        %1155 = vst.msk [vmem:[%s312 + $0x48] sm:$0xff] %vm1145, %v1054
        %1156 = vst.msk [vmem:[%s312 + $0x50] sm:$0xff] %vm1145, %v1059
        %1157 = vst.msk [vmem:[%s312 + $0x58] sm:$0xff] %vm1145, %v1062
        %1158 = vst.msk [vmem:[%s312 + $0x60] sm:$0xff] %vm1145, %v1067
        %1159 = vst.msk [vmem:[%s312 + $0x68] sm:$0xff] %vm1145, %v1070
        %1160 = vst.msk [vmem:[%s312 + $0x70] sm:$0xff] %vm1145, %v1075
        %1161 = vst.msk [vmem:[%s312 + $0x78] sm:$0xff] %vm1145, %v1078
        %1162 = vst.msk [vmem:[%s312 + $0x80] sm:$0xff] %vm1145, %v1083
        %1163 = vst.msk [vmem:[%s312 + $0x88] sm:$0xff] %vm1145, %v1086
        %1164 = vst.msk [vmem:[%s312 + $0x90] sm:$0xff] %vm1145, %v1091
        %1165 = vst.msk [vmem:[%s312 + $0x98] sm:$0xff] %vm1145, %v1094
        %1166 = vst.msk [vmem:[%s312 + $0xa0] sm:$0xff] %vm1145, %v1099
        %1167 = vst.msk [vmem:[%s312 + $0xa8] sm:$0xff] %vm1145, %v1102
        %1168 = vst.msk [vmem:[%s312 + $0xb0] sm:$0xff] %vm1145, %v1107
        %1169 = vst.msk [vmem:[%s312 + $0xb8] sm:$0xff] %vm1145, %v1110
        %1170 = vst.msk [vmem:[%s312 + $0xc0] sm:$0xff] %vm1145, %v1115
        %1171 = vst.msk [vmem:[%s312 + $0xc8] sm:$0xff] %vm1145, %v1118
        %1172 = vst.msk [vmem:[%s312 + $0xd0] sm:$0xff] %vm1145, %v1123
        %1173 = vst.msk [vmem:[%s312 + $0xd8] sm:$0xff] %vm1145, %v1126
        %1174 = vst.msk [vmem:[%s312 + $0xe0] sm:$0xff] %vm1145, %v1131
        %1175 = vst.msk [vmem:[%s312 + $0xe8] sm:$0xff] %vm1145, %v1134
        %1176 = vst.msk [vmem:[%s312 + $0xf0] sm:$0xff] %vm1145, %v1139
        %1177 = vst.msk [vmem:[%s312 + $0xf8] sm:$0xff] %vm1145, %v1142
        %s1178 = smul.u32 32, %s22
        %p1179 = scmp.lt.s32.totalorder %s1178, 63
        %s1180 = scalar_select %p1179, %s1178, 63
        %s1181 = smul.addr %s1180, 8
        %s1182 = scalar_lea.vmem %s7, %s1181
        // Predicated region
        $region57: #{mlp_forward.1} parent=47 // pred_check
          %p1183 = pneg %p192
        $region58: #{mlp_forward.1} parent=47 // pred_check_branch
          %1185 = sbr.rel (%p1183) target = $region60
        $region59: #{mlp_forward.1} parent=47 // pred_region
          %s1186 = smul.u32 32, %s22
        $region60: #{mlp_forward.1} parent=47 // pred_fallthru
          _
      $region48: #{mlp_forward.1} parent=5 // pred_fallthru
        _
      %p1187 = scmp.le.s32.totalorder 2, %s17
      // Predicated region
      $region61: #{mlp_forward.1} parent=5 // pred_check
        %p1188 = pneg %p1187
      $region62: #{mlp_forward.1} parent=5 // pred_check_branch
        %1190 = sbr.rel (%p1188) target = $region64
      $region63: #{mlp_forward.1} parent=5 // pred_region
        %s1191 = ssub.s32 %s17, 2
        // Predicated region
        $region65: #{mlp_forward.1} parent=63 // pred_check
          %p1192 = pneg %p198
        $region66: #{mlp_forward.1} parent=63 // pred_check_branch
          %1194 = sbr.rel (%p1192) target = $region68
        $region67: #{mlp_forward.1} parent=63 // pred_region
          %s1195 = smul.u32 32, %s23
          %p1196 = scmp.lt.s32.totalorder %s1195, 63
          %s1197 = scalar_select %p1196, %s1195, 63
          %s1198 = smul.addr %s1197, 8
          %s1199 = scalar_lea.vmem %s7, %s1198
        $region68: #{mlp_forward.1} parent=63 // pred_fallthru
          _
      $region64: #{mlp_forward.1} parent=5 // pred_fallthru
        _
    $region6: #{mlp_forward.1} parent=1 // loop_footer
      %s21 = sadd.s32 1, %s17
    $region7: #{mlp_forward.1} parent=1 // loop_footer_branch
      %16 = sbr.rel target = $region3
    $region8: #{mlp_forward.1} parent=1 // loop_exit
      _
    %1200 = vsyncpa [#allocation3], 1
    %s1201 = scalar_lea.sflag [#allocation3], 1
    %1202 = vsyncpa %s1201, 1
    %1203 = vsyncpa [#allocation5], 1

</llo_original>
